<compile_context>
chip_gen: v7x
topology: tpu7x:2x2x1
jax: 0.10.0
libtpu: 0.0.40
codegen_flags: <defaults>
</compile_context>

<pallas_src>
import numpy as np
import jax
import jax.numpy as jnp
from jax.experimental import pallas as pl
from jax.experimental.pallas import tpu as pltpu

# ---- module config: QuantumConvLayer(kernel_size=2, n_qubits=4, spectrum_layers=1, use_noise=0.0) ----
KERNEL_SIZE = 2
N_QUBITS = 4            # == KERNEL_SIZE**2 (RY encoding consumes every patch feature)
SPECTRUM_LAYERS = 1     # unused by the reference forward pass
USE_NOISE = 0.0         # TODO(synk): use_noise > 0 injects per-call random RX noise; not translated (set to 0).

# The block-shape contract below relies on F == N_QUBITS (input rows == output rows).
assert N_QUBITS == KERNEL_SIZE * KERNEL_SIZE, "kernel assumes n_qubits == kernel_size**2"

LANE_TILE_MAX = 32768   # lanes per grid step (multiple of 128); (8, 32768) f32 = 1 MiB block

# ---------------------------------------------------------------------------
# NumPy statevector precompute of the input-independent circuit prefix (glue).
# PennyLane convention: wire 0 is the most significant qubit.
# ---------------------------------------------------------------------------
_I2 = np.eye(2, dtype=np.complex128)
_PX = np.array([[0, 1], [1, 0]], dtype=np.complex128)
_PY = np.array([[0, -1j], [1j, 0]], dtype=np.complex128)
_PZ = np.array([[1, 0], [0, -1]], dtype=np.complex128)
_P0 = np.array([[1, 0], [0, 0]], dtype=np.complex128)
_P1 = np.array([[0, 0], [0, 1]], dtype=np.complex128)


def _rx(phi):
    return np.array([[np.cos(phi / 2), -1j * np.sin(phi / 2)],
                     [-1j * np.sin(phi / 2), np.cos(phi / 2)]], dtype=np.complex128)


def _ry(phi):
    return np.array([[np.cos(phi / 2), -np.sin(phi / 2)],
                     [np.sin(phi / 2), np.cos(phi / 2)]], dtype=np.complex128)


def _rz(phi):
    return np.array([[np.exp(-1j * phi / 2), 0], [0, np.exp(1j * phi / 2)]], dtype=np.complex128)


def _embed(gates):
    """Kron-embed {wire: 2x2 gate} into the full 2**N_QUBITS operator."""
    m = np.array([[1.0 + 0j]])
    for w in range(N_QUBITS):
        m = np.kron(m, gates.get(w, _I2))
    return m


def _fixed_state(weights):
    """State after the input-independent prefix; returns (psi0, k) with k = next weight index."""
    n = N_QUBITS
    psi = np.zeros(2 ** n, dtype=np.complex128)
    psi[0] = 1.0
    for i in range(n):
        psi = _embed({i: _rx(weights[i])}) @ psi
        psi = _embed({i: _rz(weights[n + i])}) @ psi
    k = 2 * n
    for control in range(n - 1, n - 5, -1):
        for target in [q for q in range(n) if q != control]:
            phi = weights[k]
            k += 1
            U = _embed({control: _P0}) + _embed({control: _P1, target: _rz(phi)})
            psi = U @ psi
    return psi, k


def compute_coefficients(weights):
    """Flat (3*N_QUBITS,) = [A_0..A_3, B_0..B_3, C_0..C_3] with
    <Z_i> = A_i cos(theta_i) + B_i sin(theta_i) + C_i."""
    n = N_QUBITS
    psi, k = _fixed_state(weights)
    A = np.zeros(n)
    B = np.zeros(n)
    C = np.zeros(n)
    for i in range(n):
        x0 = np.real(np.vdot(psi, _embed({i: _PX}) @ psi))
        y0 = np.real(np.vdot(psi, _embed({i: _PY}) @ psi))
        z0 = np.real(np.vdot(psi, _embed({i: _PZ}) @ psi))
        a = weights[k + i]          # final RX angle; final RZ commutes with Z and drops out
        A[i] = np.cos(a) * z0
        B[i] = -np.cos(a) * x0
        C[i] = np.sin(a) * y0
    return jnp.asarray(np.concatenate([A, B, C]).astype(np.float32))   # (3*N_QUBITS,)


def _reference_expvals(theta, weights):
    """Full statevector reference for one patch (NumPy float64) — used for spot checks."""
    n = N_QUBITS
    psi, k = _fixed_state(weights)
    for i in range(n):
        psi = _embed({i: _ry(theta[i])}) @ psi
    for i in range(n):
        psi = _embed({i: _rx(weights[k + i])}) @ psi
        psi = _embed({i: _rz(weights[k + n + i])}) @ psi
    return np.array([np.real(np.vdot(psi, _embed({i: _PZ}) @ psi)) for i in range(n)])


# ---------------------------------------------------------------------------
# Pallas kernel: per-patch normalization + polynomial trig encoding + affine combine.
# Packed feature-major layout: row = half*4 + feature (8 sublanes, full vreg
# occupancy), patch index on the lane axis (dense, multiple of 128).
# ---------------------------------------------------------------------------
def qconv_kernel(a_ref, b_ref, c_ref, patches_ref, out_ref):
    # a/b/c_ref: (8, 1) f32 per-row coefficients (feature pattern duplicated per half).
    # patches_ref / out_ref: (8, LANE_TILE) f32.
    p = patches_ref[...]

    # Per-patch squared L2 norm over each 4-row feature group (sublane reduces -> XLU).
    p2 = p * p
    ssq_lo = jnp.sum(p2[0:4, :], axis=0, keepdims=True)             # (1, LT)
    ssq_hi = jnp.sum(p2[4:8, :], axis=0, keepdims=True)
    # Zero-patch detection via max|x| == 0: exact match of torch.all(x == 0) even when
    # the squared norm underflows for tiny-but-nonzero values.
    pa = jnp.abs(p)
    zero_lo = jnp.max(pa[0:4, :], axis=0, keepdims=True) == 0.0     # (1, LT) bool
    zero_hi = jnp.max(pa[4:8, :], axis=0, keepdims=True) == 0.0
    inv_lo = jnp.where(zero_lo, 0.0, jax.lax.rsqrt(jnp.where(zero_lo, 1.0, ssq_lo)))
    inv_hi = jnp.where(zero_hi, 0.0, jax.lax.rsqrt(jnp.where(zero_hi, 1.0, ssq_hi)))

    fi = jax.lax.broadcasted_iota(jnp.int32, (8, 1), 0)             # row index 0..7
    row_lo = fi < 4
    e0 = ((fi % 4) == 0).astype(p.dtype)                            # fallback theta = [1,0,0,0]

    inv = jnp.where(row_lo, inv_lo, inv_hi)                         # (8, LT); 0 marks zero patch
    theta = jnp.where(inv == 0.0, e0, p * inv)                      # theta in [-1, 1]

    # sin/cos on [-1, 1] via short Taylor polynomials (max err < 3e-5; no range reduction).
    t2 = theta * theta
    cosv = ((t2 * (-1.0 / 720.0) + (1.0 / 24.0)) * t2 - 0.5) * t2 + 1.0
    sinv = ((t2 * (-1.0 / 5040.0) + (1.0 / 120.0)) * t2 - (1.0 / 6.0)) * t2 * theta + theta

    out_ref[...] = a_ref[...] * cosv + b_ref[...] * sinv + c_ref[...]


def _pick_lane_tile(half_p):
    """Lane tile (multiple of 128) for the packed (8, half_p) layout.

    Large blocks amortize the ~0.35 us/step overhead; capped at 32768 lanes so the
    double-buffered in+out blocks (~4 MiB) stay far below v5e's 16 MiB scoped VMEM.
    When possible the tile is halved so the parallel grid has >= 2 steps (v7x has
    two TensorCores sharding the parallel axis)."""
    rounded = max(128, ((half_p + 127) // 128) * 128)
    if rounded <= 128:
        return 128
    two_step = ((rounded // 2 + 127) // 128) * 128
    return min(LANE_TILE_MAX, two_step)


def quantum_conv_forward(x, weights):
    """x: (B, C, H, W) float32 NCHW -> (B, N_QUBITS, out_h, out_w) float32."""
    B, _, H, W = x.shape
    ks = KERNEL_SIZE
    th = (H + ks - 1) // ks * ks
    tw = (W + ks - 1) // ks * ks
    pad_h, pad_w = th - H, tw - W
    pt, pb = pad_h // 2, pad_h - pad_h // 2
    plft, prgt = pad_w // 2, pad_w - pad_w // 2

    x0 = x[:, 0, :, :]
    if pad_h > 0 or pad_w > 0:
        x0 = jnp.pad(x0, ((0, 0), (pt, pb), (plft, prgt)))
    Hp, Wp = x0.shape[-2:]
    oh, ow = Hp // ks, Wp // ks
    F = ks * ks
    P = B * oh * ow

    lane_tile = _pick_lane_tile((P + 1) // 2)
    half_pad = ((P + 1) // 2 + lane_tile - 1) // lane_tile * lane_tile
    P_pad = 2 * half_pad

    # Feature-major im2col + 8-sublane packing as ONE fused relayout pass:
    # f = r*ks + c, p = b*oh*ow + oi*ow + oj; packed[h*F + f, q] = feature f of patch
    # (h*half_pad + q).  Patch index is the lane (fast) axis -> lane-dense blocks.
    patches_fm = (x0.reshape(B, oh, ks, ow, ks)
                    .transpose(2, 4, 0, 1, 3)
                    .reshape(F, P)).astype(jnp.float32)
    patches_fm = jnp.pad(patches_fm, ((0, 0), (0, P_pad - P)))
    packed = (patches_fm.reshape(F, 2, half_pad)
                        .transpose(1, 0, 2)
                        .reshape(2 * F, half_pad))

    # Per-row coefficient columns (hoisted out of the kernel body; constant index_map).
    coef = compute_coefficients(weights)                       # (12,) f32
    a8 = jnp.tile(coef[0:N_QUBITS], 2).reshape(2 * F, 1)
    b8 = jnp.tile(coef[N_QUBITS:2 * N_QUBITS], 2).reshape(2 * F, 1)
    c8 = jnp.tile(coef[2 * N_QUBITS:3 * N_QUBITS], 2).reshape(2 * F, 1)

    out_packed = pl.pallas_call(
        qconv_kernel,
        out_shape=jax.ShapeDtypeStruct((2 * F, half_pad), jnp.float32),
        grid_spec=pltpu.PrefetchScalarGridSpec(
            num_scalar_prefetch=0,
            grid=(half_pad // lane_tile,),
            in_specs=[
                pl.BlockSpec((2 * F, 1), lambda i: (0, 0)),            # A
                pl.BlockSpec((2 * F, 1), lambda i: (0, 0)),            # B
                pl.BlockSpec((2 * F, 1), lambda i: (0, 0)),            # C
                pl.BlockSpec((2 * F, lane_tile), lambda i: (0, i)),    # packed patches
            ],
            out_specs=pl.BlockSpec((2 * F, lane_tile), lambda i: (0, i)),
        ),
        compiler_params=pltpu.CompilerParams(dimension_semantics=("parallel",)),
    )(a8, b8, c8, packed)

    # Unpack + permute to the module's (B, nq, oh, ow) layout (one fused relayout pass).
    # TODO(synk): return channel-major (nq, B, oh, ow) to skip this if the consumer allows.
    out_fm = (out_packed.reshape(2, F, half_pad)
                        .transpose(1, 0, 2)
                        .reshape(F, P_pad))[:, :P]
    out = out_fm.reshape(N_QUBITS, B, oh, ow).transpose(1, 0, 2, 3)
    return out


if __name__ == "__main__":
    key = jax.random.PRNGKey(0)
    x = jax.random.normal(key, (2, 4, 16, 16), dtype=jnp.float32)
    # Exercise the all-zero-patch fallback path on patch (b=0, oi=0, oj=0).
    x = x.at[0, 0, 0:KERNEL_SIZE, 0:KERNEL_SIZE].set(0.0)

    n = N_QUBITS
    total_params = n * n + 3 * n                                  # 28 for n=4
    weights = np.random.default_rng(0).uniform(0.0, 2.0 * np.pi, size=total_params)

    out = quantum_conv_forward(x, weights)
    out = jax.block_until_ready(out)
    assert out.shape == (2, N_QUBITS, 8, 8), out.shape

    # Spot-check against a full statevector reference (NumPy, float64).
    x_np = np.asarray(x, dtype=np.float64)
    out_np = np.asarray(out)
    for (b, oi, oj) in [(0, 0, 0), (1, 3, 5), (0, 7, 7), (1, 0, 0)]:
        patch = x_np[b, 0,
                     oi * KERNEL_SIZE:(oi + 1) * KERNEL_SIZE,
                     oj * KERNEL_SIZE:(oj + 1) * KERNEL_SIZE].reshape(-1)
        nrm = np.linalg.norm(patch)
        theta = np.zeros_like(patch)
        theta[0] = 1.0
        if nrm > 0:
            theta = patch / nrm
        ref = _reference_expvals(theta, weights)
        assert np.allclose(out_np[b, :, oi, oj], ref, atol=1e-4), (out_np[b, :, oi, oj], ref)

    print("KERNEL_OK")
</pallas_src>

<mosaic_0001>
module attributes {stable_mosaic.version = 11 : i64} {
  func.func @qconv_kernel(%arg0: i32, %arg1: memref<8x1xf32, #tpu.memory_space<vmem>>, %arg2: memref<8x1xf32, #tpu.memory_space<vmem>>, %arg3: memref<8x1xf32, #tpu.memory_space<vmem>>, %arg4: memref<8x128xf32, #tpu.memory_space<vmem>>, %arg5: memref<8x128xf32, #tpu.memory_space<vmem>>) attributes {dimension_semantics = [#tpu.dimension_semantics<parallel>], iteration_bounds = array<i64: 1>, scalar_prefetch = 0 : i64, scratch_operands = 0 : i64, tpu.core_type = #tpu.core_type<tc>, window_params = [{pipeline_mode = #tpu.pipeline_mode<synchronous>, transform_indices = @transform_0, window_bounds = array<i64: 8, 1>}, {pipeline_mode = #tpu.pipeline_mode<synchronous>, transform_indices = @transform_1, window_bounds = array<i64: 8, 1>}, {pipeline_mode = #tpu.pipeline_mode<synchronous>, transform_indices = @transform_2, window_bounds = array<i64: 8, 1>}, {transform_indices = @transform_3, window_bounds = array<i64: 8, 128>}, {transform_indices = @transform_4, window_bounds = array<i64: 8, 128>}]} {
    %c0 = arith.constant 0 : index
    %c0_0 = arith.constant 0 : index
    %0 = vector.load %arg4[%c0, %c0_0] : memref<8x128xf32, #tpu.memory_space<vmem>>, vector<8x128xf32>
    %1 = arith.mulf %0, %0 : vector<8x128xf32>
    %2 = vector.extract_strided_slice %1 {offsets = [0, 0], sizes = [4, 128], strides = [1, 1]} : vector<8x128xf32> to vector<4x128xf32>
    %cst = arith.constant dense<0.000000e+00> : vector<128xf32>
    %3 = vector.multi_reduction <add>, %2, %cst [0] : vector<4x128xf32> to vector<128xf32>
    %4 = vector.shape_cast %3 : vector<128xf32> to vector<1x128xf32>
    %5 = vector.extract_strided_slice %1 {offsets = [4, 0], sizes = [4, 128], strides = [1, 1]} : vector<8x128xf32> to vector<4x128xf32>
    %cst_1 = arith.constant dense<0.000000e+00> : vector<128xf32>
    %6 = vector.multi_reduction <add>, %5, %cst_1 [0] : vector<4x128xf32> to vector<128xf32>
    %7 = vector.shape_cast %6 : vector<128xf32> to vector<1x128xf32>
    %8 = math.absf %0 : vector<8x128xf32>
    %9 = vector.extract_strided_slice %8 {offsets = [0, 0], sizes = [4, 128], strides = [1, 1]} : vector<8x128xf32> to vector<4x128xf32>
    %cst_2 = arith.constant dense<0xFF800000> : vector<128xf32>
    %10 = vector.multi_reduction <maximumf>, %9, %cst_2 [0] : vector<4x128xf32> to vector<128xf32>
    %11 = vector.shape_cast %10 : vector<128xf32> to vector<1x128xf32>
    %cst_3 = arith.constant 0.000000e+00 : f32
    %12 = vector.broadcast %cst_3 : f32 to vector<1x128xf32>
    %13 = arith.cmpf oeq, %11, %12 : vector<1x128xf32>
    %14 = vector.extract_strided_slice %8 {offsets = [4, 0], sizes = [4, 128], strides = [1, 1]} : vector<8x128xf32> to vector<4x128xf32>
    %cst_4 = arith.constant dense<0xFF800000> : vector<128xf32>
    %15 = vector.multi_reduction <maximumf>, %14, %cst_4 [0] : vector<4x128xf32> to vector<128xf32>
    %16 = vector.shape_cast %15 : vector<128xf32> to vector<1x128xf32>
    %cst_5 = arith.constant 0.000000e+00 : f32
    %17 = vector.broadcast %cst_5 : f32 to vector<1x128xf32>
    %18 = arith.cmpf oeq, %16, %17 : vector<1x128xf32>
    %cst_6 = arith.constant 1.000000e+00 : f32
    %19 = vector.broadcast %cst_6 : f32 to vector<1x128xf32>
    %20 = arith.select %13, %19, %4 : vector<1x128xi1>, vector<1x128xf32>
    %21 = math.rsqrt %20 : vector<1x128xf32>
    %cst_7 = arith.constant 0.000000e+00 : f32
    %22 = vector.broadcast %cst_7 : f32 to vector<1x128xf32>
    %23 = arith.select %13, %22, %21 : vector<1x128xi1>, vector<1x128xf32>
    %cst_8 = arith.constant 1.000000e+00 : f32
    %24 = vector.broadcast %cst_8 : f32 to vector<1x128xf32>
    %25 = arith.select %18, %24, %7 : vector<1x128xi1>, vector<1x128xf32>
    %26 = math.rsqrt %25 : vector<1x128xf32>
    %cst_9 = arith.constant 0.000000e+00 : f32
    %27 = vector.broadcast %cst_9 : f32 to vector<1x128xf32>
    %28 = arith.select %18, %27, %26 : vector<1x128xi1>, vector<1x128xf32>
    %29 = tpu.iota {dimensions = array<i32: 0>} : vector<8x1xi32>
    %c4_i32 = arith.constant 4 : i32
    %30 = vector.broadcast %c4_i32 : i32 to vector<8x1xi32>
    %31 = arith.cmpi slt, %29, %30 : vector<8x1xi32>
    %c4_i32_10 = arith.constant 4 : i32
    %c0_i32 = arith.constant 0 : i32
    %32 = arith.cmpi eq, %c4_i32_10, %c0_i32 : i32
    %c1_i32 = arith.constant 1 : i32
    %33 = arith.select %32, %c1_i32, %c4_i32_10 : i32
    %34 = vector.broadcast %33 : i32 to vector<8x1xi32>
    %35 = arith.remsi %29, %34 : vector<8x1xi32>
    %c0_i32_11 = arith.constant 0 : i32
    %36 = vector.broadcast %c0_i32_11 : i32 to vector<8x1xi32>
    %37 = arith.cmpi ne, %35, %36 : vector<8x1xi32>
    %c0_i32_12 = arith.constant 0 : i32
    %38 = vector.broadcast %c0_i32_12 : i32 to vector<8x1xi32>
    %39 = arith.cmpi slt, %35, %38 : vector<8x1xi32>
    %c0_i32_13 = arith.constant 0 : i32
    %40 = arith.cmpi slt, %33, %c0_i32_13 : i32
    %41 = vector.broadcast %40 : i1 to vector<8x1xi1>
    %42 = vector.broadcast %41 : vector<8x1xi1> to vector<8x1xi1>
    %43 = arith.xori %39, %42 : vector<8x1xi1>
    %44 = arith.andi %43, %37 : vector<8x1xi1>
    %45 = vector.broadcast %33 : i32 to vector<8x1xi32>
    %46 = arith.addi %35, %45 : vector<8x1xi32>
    %47 = arith.select %44, %46, %35 : vector<8x1xi1>, vector<8x1xi32>
    %c0_i32_14 = arith.constant 0 : i32
    %48 = vector.broadcast %c0_i32_14 : i32 to vector<8x1xi32>
    %49 = arith.cmpi eq, %47, %48 : vector<8x1xi32>
    %50 = arith.extui %49 : vector<8x1xi1> to vector<8x1xi32>
    %51 = arith.sitofp %50 : vector<8x1xi32> to vector<8x1xf32>
    %52 = vector.shape_cast %31 : vector<8x1xi1> to vector<8x1xi1>
    %53 = vector.broadcast %52 : vector<8x1xi1> to vector<8x128xi1>
    %54 = vector.shape_cast %23 : vector<1x128xf32> to vector<1x128xf32>
    %55 = vector.broadcast %54 : vector<1x128xf32> to vector<8x128xf32>
    %56 = vector.shape_cast %28 : vector<1x128xf32> to vector<1x128xf32>
    %57 = vector.broadcast %56 : vector<1x128xf32> to vector<8x128xf32>
    %58 = arith.select %53, %55, %57 : vector<8x128xi1>, vector<8x128xf32>
    %cst_15 = arith.constant 0.000000e+00 : f32
    %59 = vector.broadcast %cst_15 : f32 to vector<8x128xf32>
    %60 = arith.cmpf oeq, %58, %59 : vector<8x128xf32>
    %61 = arith.mulf %0, %58 : vector<8x128xf32>
    %62 = vector.shape_cast %51 : vector<8x1xf32> to vector<8x1xf32>
    %63 = vector.broadcast %62 : vector<8x1xf32> to vector<8x128xf32>
    %64 = arith.select %60, %63, %61 : vector<8x128xi1>, vector<8x128xf32>
    %65 = arith.mulf %64, %64 : vector<8x128xf32>
    %cst_16 = arith.constant -0.00138888892 : f32
    %66 = vector.broadcast %cst_16 : f32 to vector<8x128xf32>
    %67 = arith.mulf %65, %66 : vector<8x128xf32>
    %cst_17 = arith.constant 0.0416666679 : f32
    %68 = vector.broadcast %cst_17 : f32 to vector<8x128xf32>
    %69 = arith.addf %67, %68 : vector<8x128xf32>
    %70 = arith.mulf %69, %65 : vector<8x128xf32>
    %cst_18 = arith.constant 5.000000e-01 : f32
    %71 = vector.broadcast %cst_18 : f32 to vector<8x128xf32>
    %72 = arith.subf %70, %71 : vector<8x128xf32>
    %73 = arith.mulf %72, %65 : vector<8x128xf32>
    %cst_19 = arith.constant 1.000000e+00 : f32
    %74 = vector.broadcast %cst_19 : f32 to vector<8x128xf32>
    %75 = arith.addf %73, %74 : vector<8x128xf32>
    %cst_20 = arith.constant -1.98412701E-4 : f32
    %76 = vector.broadcast %cst_20 : f32 to vector<8x128xf32>
    %77 = arith.mulf %65, %76 : vector<8x128xf32>
    %cst_21 = arith.constant 0.00833333377 : f32
    %78 = vector.broadcast %cst_21 : f32 to vector<8x128xf32>
    %79 = arith.addf %77, %78 : vector<8x128xf32>
    %80 = arith.mulf %79, %65 : vector<8x128xf32>
    %cst_22 = arith.constant 0.166666672 : f32
    %81 = vector.broadcast %cst_22 : f32 to vector<8x128xf32>
    %82 = arith.subf %80, %81 : vector<8x128xf32>
    %83 = arith.mulf %82, %65 : vector<8x128xf32>
    %84 = arith.mulf %83, %64 : vector<8x128xf32>
    %85 = arith.addf %84, %64 : vector<8x128xf32>
    %c0_23 = arith.constant 0 : index
    %c0_24 = arith.constant 0 : index
    %86 = vector.load %arg1[%c0_23, %c0_24] : memref<8x1xf32, #tpu.memory_space<vmem>>, vector<8x1xf32>
    %87 = vector.broadcast %86 : vector<8x1xf32> to vector<8x128xf32>
    %88 = arith.mulf %87, %75 : vector<8x128xf32>
    %c0_25 = arith.constant 0 : index
    %c0_26 = arith.constant 0 : index
    %89 = vector.load %arg2[%c0_25, %c0_26] : memref<8x1xf32, #tpu.memory_space<vmem>>, vector<8x1xf32>
    %90 = vector.broadcast %89 : vector<8x1xf32> to vector<8x128xf32>
    %91 = arith.mulf %90, %85 : vector<8x128xf32>
    %92 = arith.addf %88, %91 : vector<8x128xf32>
    %c0_27 = arith.constant 0 : index
    %c0_28 = arith.constant 0 : index
    %93 = vector.load %arg3[%c0_27, %c0_28] : memref<8x1xf32, #tpu.memory_space<vmem>>, vector<8x1xf32>
    %94 = vector.broadcast %93 : vector<8x1xf32> to vector<8x128xf32>
    %95 = arith.addf %92, %94 : vector<8x128xf32>
    %c0_29 = arith.constant 0 : index
    %c0_30 = arith.constant 0 : index
    %96 = vector.load %arg5[%c0_29, %c0_30] : memref<8x128xf32, #tpu.memory_space<vmem>>, vector<8x128xf32>
    tpu.vector_store %arg5[%c0_29, %c0_30], %95 {strides = array<i32>} : memref<8x128xf32, #tpu.memory_space<vmem>>, vector<8x128xf32>,
    return
  }
  func.func @transform_0(%arg0: i32) -> (i32, i32) {
    %c0_i32 = arith.constant 0 : i32
    %c0_i32_0 = arith.constant 0 : i32
    %c0_i32_1 = arith.constant 0 : i32
    return %c0_i32, %c0_i32_0 : i32, i32
  }
  func.func @transform_1(%arg0: i32) -> (i32, i32) {
    %c0_i32 = arith.constant 0 : i32
    %c0_i32_0 = arith.constant 0 : i32
    %c0_i32_1 = arith.constant 0 : i32
    return %c0_i32, %c0_i32_0 : i32, i32
  }
  func.func @transform_2(%arg0: i32) -> (i32, i32) {
    %c0_i32 = arith.constant 0 : i32
    %c0_i32_0 = arith.constant 0 : i32
    %c0_i32_1 = arith.constant 0 : i32
    return %c0_i32, %c0_i32_0 : i32, i32
  }
  func.func @transform_3(%arg0: i32) -> (i32, i32) {
    %c0_i32 = arith.constant 0 : i32
    %c0_i32_0 = arith.constant 0 : i32
    return %c0_i32, %arg0 : i32, i32
  }
  func.func @transform_4(%arg0: i32) -> (i32, i32) {
    %c0_i32 = arith.constant 0 : i32
    %c0_i32_0 = arith.constant 0 : i32
    return %c0_i32, %arg0 : i32, i32
  }
}

</mosaic_0001>

<llo_original>
// kernel: tpu_custom_call.1
$region0: #{tpu_custom_call.1}
  #allocation0 [shape = 'u32[]', space=smem, size = 0x4, offset = 0x4, fixed_abs, tag = 'smem constant byte address 0x4 - core index']
  #allocation1 [shape = 'u32[144,128]{1,0:T(1,128)}', space=vmem, size = 0x12000, scoped, tag = 'internal scratch']
  %s0 = inlined_call_operand.vmem [shape: f32[8,1], index: 0, kind: input, shape index: {}]
  %s1 = inlined_call_operand.vmem [shape: f32[8,1], index: 1, kind: input, shape index: {}]
  %s2 = inlined_call_operand.vmem [shape: f32[8,1], index: 2, kind: input, shape index: {}]
  %s3 = inlined_call_operand.vmem [shape: f32[8,128], index: 3, kind: input, shape index: {}]
  %s4 = inlined_call_operand.hbm [shape: f32[8,128], index: 4, kind: output, shape index: {}]
  %s5 = sld [smem:[#allocation0]]
  $region26: #{tpu_custom_call.1} parent=0
    _
  %s7 = ssub.s32 1, %s5
  %s8 = scalar_select 0, %s7, %s5
  $region1: #{tpu_custom_call.1} parent=0
    #allocation2 [shape = 'u8[4096]{0}', space=vmem, size = 0x1000, scoped, tag = 'output window, operand 0, single buffered']
    #allocation3 [shape = 's32[1]{0}', space=sflag, size = 0x4, scoped, tag = 'scoped memory for tpu_custom_call.1']
    %9 = vsyncpa [#allocation3], 0
    // Predicated region
    $region2: #{tpu_custom_call.1} parent=1 // pred_check
      _
    $region3: #{tpu_custom_call.1} parent=1 // pred_check_branch
      %11 = sbr.rel (0) target = $region5
    $region4: #{tpu_custom_call.1} parent=1 // pred_region
      _
    $region5: #{tpu_custom_call.1} parent=1 // pred_fallthru
      _
    // Predicated region
    $region6: #{tpu_custom_call.1} parent=1 // pred_check
      _
    $region7: #{tpu_custom_call.1} parent=1 // pred_check_branch
      %13 = sbr.rel (0) target = $region9
    $region8: #{tpu_custom_call.1} parent=1 // pred_region
      _
    $region9: #{tpu_custom_call.1} parent=1 // pred_fallthru
      _
    // Predicated region
    $region10: #{tpu_custom_call.1} parent=1 // pred_check
      _
    $region11: #{tpu_custom_call.1} parent=1 // pred_check_branch
      %15 = sbr.rel (0) target = $region13
    $region12: #{tpu_custom_call.1} parent=1 // pred_region
      _
    $region13: #{tpu_custom_call.1} parent=1 // pred_fallthru
      _
    // Predicated region
    $region14: #{tpu_custom_call.1} parent=1 // pred_check
      _
    $region15: #{tpu_custom_call.1} parent=1 // pred_check_branch
      %17 = sbr.rel (0) target = $region17
    $region16: #{tpu_custom_call.1} parent=1 // pred_region
      _
    $region17: #{tpu_custom_call.1} parent=1 // pred_fallthru
      _
    %v18 = vld [vmem:[%s3] sm:$0xff]
    %v19 = vmul.f32 %v18, %v18
    %vm20 = vcmask 1043456
    %v21 = vsel %vm20, %v19, 0.0
    %v22 = vrot.slane %v21, 4
    %v23 = vadd.f32 %v21, %v22
    %v24 = vrot.slane %v23, 2
    %v25 = vadd.f32 %v23, %v24
    %v26 = vrot.slane %v25, 1
    %v27 = vadd.f32 %v25, %v26
    %v29 = vrot.slane %v19, 4
    %v31 = vsel %vm20, %v29, 0.0
    %v32 = vrot.slane %v31, 4
    %v33 = vadd.f32 %v31, %v32
    %v34 = vrot.slane %v33, 2
    %v35 = vadd.f32 %v33, %v34
    %v36 = vrot.slane %v35, 1
    %v37 = vadd.f32 %v35, %v36
    %v38 = vand.u32 2147483647, %v18
    %v39 = vsel %vm20, %v38, -inf
    %v40 = vrot.slane %v39, 4
    %v41 = vmax.f32 %v39, %v40
    %v42 = vrot.slane %v41, 2
    %v43 = vmax.f32 %v41, %v42
    %v44 = vrot.slane %v43, 1
    %v45 = vmax.f32 %v43, %v44
    %vm46 = vcmp.eq.f32.partialorder %v45, 0.0
    %vm47 = vcmask 1047556
    %v48 = vsel %vm47, %v38, -inf
    %v49 = vrot.slane %v48, 4
    %v50 = vmax.f32 %v48, %v49
    %v51 = vrot.slane %v50, 2
    %v52 = vmax.f32 %v50, %v51
    %v53 = vrot.slane %v52, 1
    %v54 = vmax.f32 %v52, %v53
    %vm55 = vcmp.eq.f32.partialorder %v54, 0.0
    %v56 = vsel %vm46, 1.0, %v27
    %v57 = vrsqrt.pop %v56
    %v58 = vsel %vm46, 0.0, %v57
    %v59 = vsel %vm55, 1.0, %v37
    %v60 = vrsqrt.pop %v59
    %v61 = vsel %vm55, 0.0, %v60
    %v62 = vlaneseq
    %v63 = vshrl.u32 %v62, 7
    %vm64 = vcmp.lt.s32.totalorder %v63, 4
    %vm65 = vcmp.lt.s32.totalorder %v63, 0
    %v66 = vsub.s32 0, %v63
    %v67 = vsel %vm65, %v66, %v63
    %v68 = vshrl.u32 %v67, 2
    %v69 = vand.u32 %v67, 3
    %v70 = vsub.s32 0, %v69
    %v71 = vsel %vm65, %v70, %v69
    %vm72 = vcmp.ne.s32.totalorder %v71, 0
    %vm73 = vcmp.lt.s32.totalorder %v71, 0
    %vm74 = vmand %vm73, %vm72
    %v75 = vadd.s32 %v71, 4
    %v76 = vsel %vm74, %v75, %v71
    %vm77 = vcmp.eq.s32.totalorder %v76, 0
    %v78 = vsel %vm77, 1, 0
    %v79 = vcvt.s32.f32 %v78
    %v80 = vsel %vm64, 1, 0
    %vm81 = vcmp.eq.s32.totalorder %v80, 1
    %v82 = vsel %vm81, %v58, %v61
    %vm83 = vcmp.eq.f32.partialorder %v82, 0.0
    %v84 = vmul.f32 %v18, %v82
    %v85 = vsel %vm83, %v79, %v84
    %v86 = vmul.f32 %v85, %v85
    %v87 = vmul.f32 %v86, -0.0013888889
    %v88 = vadd.f32 %v87, 0.041666668
    %v89 = vmul.f32 %v88, %v86
    %v90 = vsub.f32 %v89, 0.5
    %v91 = vmul.f32 %v90, %v86
    %v92 = vadd.f32 %v91, 1.0
    %v93 = vmul.f32 %v86, -0.0001984127
    %v94 = vadd.f32 %v93, 0.008333334
    %v95 = vmul.f32 %v94, %v86
    %v96 = vsub.f32 %v95, 0.16666667
    %v97 = vmul.f32 %v96, %v86
    %v98 = vmul.f32 %v97, %v85
    %v99 = vadd.f32 %v98, %v85
    %v100 = vld [vmem:[%s0] sm:$0xff]
    %102 = vset.pattern.permute.xlu0 0
    %103 = vperm.xlu0 %102, %v100
    %v104 = vpop.permute.xlu0 %103
    %v106 = vmul.f32 %v104, %v92
    %v107 = vld [vmem:[%s1] sm:$0xff]
    %109 = vset.pattern.permute.xlu0 0
    %110 = vperm.xlu0 %109, %v107
    %v111 = vpop.permute.xlu0 %110
    %v113 = vmul.f32 %v111, %v99
    %v114 = vadd.f32 %v106, %v113
    %v115 = vld [vmem:[%s2] sm:$0xff]
    %117 = vset.pattern.permute.xlu0 0
    %118 = vperm.xlu0 %117, %v115
    %v119 = vpop.permute.xlu0 %118
    %v121 = vadd.f32 %v114, %v119
    %122 = vst [vmem:[#allocation2] sm:$0xff] %v121
    // Predicated region
    $region18: #{tpu_custom_call.1} parent=1 // pred_check
      _
    $region19: #{tpu_custom_call.1} parent=1 // pred_check_branch
      %124 = sbr.rel (0) target = $region21
    $region20: #{tpu_custom_call.1} parent=1 // pred_region
      %s126 = ssub.s32 128, 128
      %127 = vsyncadd [#allocation3], %s126
      %s129 = sshll.u32 [#allocation2], 4
      %s130 = int_to_ptr.vmem [resolvable:$true] %s129
      %132 = dma.vmem_to_hbm [thread:$0]  %s130, 128, %s4, [#allocation3]
    $region21: #{tpu_custom_call.1} parent=1 // pred_fallthru
      _
    // Predicated region
    $region22: #{tpu_custom_call.1} parent=1 // pred_check
      _
    $region23: #{tpu_custom_call.1} parent=1 // pred_check_branch
      %134 = sbr.rel (0) target = $region25
    $region24: #{tpu_custom_call.1} parent=1 // pred_region
      %135 = dma.done [#allocation3], 128
    $region25: #{tpu_custom_call.1} parent=1 // pred_fallthru
      _
    %136 = vsyncpa [#allocation3], 1

</llo_original>
